<compile_context>
chip_gen: v5e
topology: v5e:2x2
jax: 0.10.0
libtpu: 0.0.40
codegen_flags: <defaults>
</compile_context>

<pallas_src>
import numpy as np
import jax
import jax.numpy as jnp
from jax.experimental import pallas as pl
from jax.experimental.pallas import tpu as pltpu


def _round_up(x: int, m: int) -> int:
    return ((x + m - 1) // m) * m


def _default_tile_bytes() -> int:
    """~4 MiB of f32 input per grid step; ~8 MiB on v7x (3.2 TB/s HBM) so the
    ~0.35 us fixed per-step overhead stays <10% of step time."""
    try:
        kind = jax.devices()[0].device_kind.lower()
    except Exception:
        kind = ""
    return (8 << 20) if "v7" in kind else (4 << 20)


def _choose_tiling(N: int, B: int, target_bytes: int):
    """Pick (L, M, T, needs_pad) for the (B, M, L) voxel tiling.

    L: lane width  -- largest multiple of 128 dividing N (free reshape, no pad
       copy); falls back to 128 + -inf padding when N % 128 != 0.
    M: row count   -- ceil(N_padded / L).
    T: row tile    -- multiple of 32 (int8 (32,128) tiling) sized to about
       target_bytes of f32 input, capped so the grid keeps >= ~4 total steps
       (v7x megacore sharding + pipeline depth).
    """
    L = 0
    for cand in (2048, 1024, 512, 256, 128):
        if N % cand == 0:
            L = cand
            break
    needs_pad = (L == 0)
    if needs_pad:
        L = 128
    M = _round_up(N, L) // L

    if M <= 32:
        T = M                                   # full-extent block is always legal
    else:
        T = min(M, max(32, target_bytes // (4 * L)))
        T -= T % 32
        min_row_steps = -(-4 // B)              # want >= ~4 total grid steps
        T = min(T, _round_up(-(-M // min_row_steps), 32))
    return L, M, T, needs_pad


def _threshold_mask_kernel(thr_ref, scores_ref, mask_ref):
    # thr_ref   : (1,)       float32  SMEM scalar
    # scores_ref: (1, T, L)  float32  VMEM tile
    # mask_ref  : (1, T, L)  int8     VMEM tile
    mask_ref[...] = (scores_ref[...] > thr_ref[0]).astype(jnp.int8)


def rpn3d_postprocess_pallas(coords, scores, threshold=0.5, target_tile_bytes=None):
    """
    coords : (B, 3, D, H, W) float32 device array
    scores : (B, 1, D, H, W) float32 device array
    Returns (points, mask):
      points: list of (3,) numpy arrays, one per voxel with score > threshold,
              in (b, d, h, w) row-major scan order (matches the torch loop).
      mask  : (B, M, L) int8 device array.  NOTE: it may contain padded lanes
              beyond voxel N-1 (always 0) -- callers must flatten and slice [:N].
    """
    B, C, D, H, W = coords.shape
    assert scores.shape == (B, 1, D, H, W)
    N = D * H * W

    if target_tile_bytes is None:
        target_tile_bytes = _default_tile_bytes()
    target_tile_bytes = max(1 << 20, int(target_tile_bytes))   # never run tiny tiles

    L, M, T, needs_pad = _choose_tiling(N, B, target_tile_bytes)

    scores_flat = scores.reshape(B, N)
    if needs_pad:
        # Rare fallback (N not a multiple of 128): pad with -inf so padded
        # lanes can never pass the strict '>' test.  In the common case the
        # reshape below is free and no extra HBM pass happens.
        scores_flat = jnp.pad(scores_flat, ((0, 0), (0, M * L - N)),
                              constant_values=-jnp.inf)
    scores_tiled = scores_flat.reshape(B, M, L)
    thr_arr = jnp.asarray([threshold], dtype=jnp.float32)

    mask = pl.pallas_call(
        _threshold_mask_kernel,
        out_shape=jax.ShapeDtypeStruct((B, M, L), jnp.int8),
        grid_spec=pltpu.PrefetchScalarGridSpec(
            num_scalar_prefetch=0,
            grid=(B, pl.cdiv(M, T)),
            in_specs=[
                pl.BlockSpec(memory_space=pltpu.MemorySpace.SMEM),  # threshold
                pl.BlockSpec((1, T, L), lambda b, t: (b, t, 0)),    # scores tile
            ],
            out_specs=pl.BlockSpec((1, T, L), lambda b, t: (b, t, 0)),
        ),
        compiler_params=pltpu.CompilerParams(
            dimension_semantics=("parallel", "parallel"),
            vmem_limit_bytes=32 * 1024 * 1024,
        ),
        cost_estimate=pl.CostEstimate(
            flops=B * M * L, transcendentals=0, bytes_accessed=5 * B * M * L),
    )(thr_arr, scores_tiled)

    # ---- Host glue: one PCIe pull of the small int8 mask, ONE device gather ----
    # TODO(synk): the dynamic-length list of selected points has no fixed-shape
    # TPU equivalent; the final compaction is driven by the kernel's mask on host.
    mask_np = np.asarray(jax.device_get(mask))             # (B, M, L) int8
    valid = mask_np.reshape(B, -1)[:, :N]                  # drop lane padding
    b_idx, n_idx = np.nonzero(valid)                       # row-major == (b,d,h,w) order
    if b_idx.size == 0:
        return [], mask

    coords_flat = coords.reshape(B, C, N)                  # free reshape, stays on device
    sel = jax.device_get(
        coords_flat[jnp.asarray(b_idx, dtype=jnp.int32), :,
                    jnp.asarray(n_idx, dtype=jnp.int32)]   # (k, 3) single gather
    )
    return list(sel), mask


def _reference(coords, scores, threshold=0.5):
    """Vectorized numpy equivalent of the PyTorch nested-loop forward
    (np.argwhere preserves the (b, d, h, w) row-major scan order)."""
    coords = np.asarray(coords)
    scores = np.asarray(scores)
    idx = np.argwhere(scores[:, 0] > threshold)            # (k, 4) rows (b, d, h, w)
    return [coords[b, :, d, h, w] for b, d, h, w in idx]


def _check(points, ref_points):
    assert len(points) == len(ref_points), (len(points), len(ref_points))
    if len(points):
        np.testing.assert_allclose(np.stack(points), np.stack(ref_points),
                                   rtol=1e-6, atol=1e-6)


if __name__ == "__main__":
    key = jax.random.PRNGKey(0)

    def run_case(k, B, C, D, H, W, threshold=0.5):
        kc, ks = jax.random.split(k)
        coords = jax.random.normal(kc, (B, C, D, H, W), dtype=jnp.float32)
        scores = jax.random.uniform(ks, (B, 1, D, H, W), dtype=jnp.float32)
        pts, mask = rpn3d_postprocess_pallas(coords, scores, threshold=threshold)
        jax.block_until_ready(mask)
        _check(pts, _reference(jax.device_get(coords), jax.device_get(scores), threshold))

    k1, k2, k3, key = jax.random.split(key, 4)
    # 1) N = 8192 = 4*2048 -> L = 2048, free reshape (no pad), single row tile.
    run_case(k1, B=2, C=3, D=4, H=16, W=128)
    # 2) N = 105 (not a multiple of 128) -> -inf pad fallback path.
    run_case(k2, B=2, C=3, D=3, H=5, W=7)
    # 3) N = 5248 = 41*128 -> L = 128, M = 41 > 32 -> T = 32, non-divisible grid
    #    (last row tile is partial; exercises dropped OOB writes).
    run_case(k3, B=1, C=3, D=4, H=41, W=32)

    print("KERNEL_OK")
</pallas_src>

<mosaic_0001>
module attributes {stable_mosaic.version = 11 : i64} {
  func.func @_threshold_mask_kernel(%arg0: i32, %arg1: i32, %arg2: memref<1xf32, #tpu.memory_space<smem>>, %arg3: memref<1x4x2048xf32, #tpu.memory_space<vmem>>, %arg4: memref<1x4x2048xi8, #tpu.memory_space<vmem>>) attributes {dimension_semantics = [#tpu.dimension_semantics<parallel>, #tpu.dimension_semantics<parallel>], iteration_bounds = array<i64: 2, 1>, scalar_prefetch = 0 : i64, scratch_operands = 0 : i64, tpu.core_type = #tpu.core_type<tc>, window_params = [{transform_indices = @transform_0, window_bounds = array<i64: 1>}, {transform_indices = @transform_1, window_bounds = array<i64: 1, 4, 2048>}, {transform_indices = @transform_2, window_bounds = array<i64: 1, 4, 2048>}]} {
    %c0 = arith.constant 0 : index
    %c0_0 = arith.constant 0 : index
    %c0_1 = arith.constant 0 : index
    %0 = vector.load %arg3[%c0, %c0_0, %c0_1] : memref<1x4x2048xf32, #tpu.memory_space<vmem>>, vector<1x4x2048xf32>
    %c0_2 = arith.constant 0 : index
    %1 = memref.load %arg2[%c0_2] : memref<1xf32, #tpu.memory_space<smem>>
    %2 = vector.broadcast %1 : f32 to vector<1x4x2048xf32>
    %3 = arith.cmpf ogt, %0, %2 : vector<1x4x2048xf32>
    %4 = arith.extui %3 : vector<1x4x2048xi1> to vector<1x4x2048xi8>
    %c0_3 = arith.constant 0 : index
    %c0_4 = arith.constant 0 : index
    %c0_5 = arith.constant 0 : index
    %5 = vector.load %arg4[%c0_3, %c0_4, %c0_5] : memref<1x4x2048xi8, #tpu.memory_space<vmem>>, vector<1x4x2048xi8>
    tpu.vector_store %arg4[%c0_3, %c0_4, %c0_5], %4 {strides = array<i32>} : memref<1x4x2048xi8, #tpu.memory_space<vmem>>, vector<1x4x2048xi8>,
    return
  }
  func.func @transform_0(%arg0: i32, %arg1: i32) -> i32 {
    %c0_i32 = arith.constant 0 : i32
    %c0_i32_0 = arith.constant 0 : i32
    return %c0_i32 : i32
  }
  func.func @transform_1(%arg0: i32, %arg1: i32) -> (i32, i32, i32) {
    %c0_i32 = arith.constant 0 : i32
    %c0_i32_0 = arith.constant 0 : i32
    return %arg0, %arg1, %c0_i32 : i32, i32, i32
  }
  func.func @transform_2(%arg0: i32, %arg1: i32) -> (i32, i32, i32) {
    %c0_i32 = arith.constant 0 : i32
    %c0_i32_0 = arith.constant 0 : i32
    return %arg0, %arg1, %c0_i32 : i32, i32, i32
  }
}

</mosaic_0001>

<llo_original>
// kernel: tpu_custom_call.1
$region0: #{tpu_custom_call.1}
  #allocation0 [shape = 'u32[]', space=smem, size = 0x4, offset = 0x4, fixed_abs, tag = 'smem constant byte address 0x4 - core index']
  #allocation1 [shape = 'u32[72,128]{1,0:T(1,128)}', space=vmem, size = 0x9000, scoped, tag = 'internal scratch']
  #allocation2 [shape = 'f32[1]{0:T(128)S(6)}', space=smem, size = 0x200, scoped, tag = 'scoped memory for tpu_custom_call.1']
  %s0 = inlined_call_operand.<no memory space> [shape: f32[1], index: 0, kind: input, shape index: {}]
  %s1 = inlined_call_operand.hbm [shape: f32[2,4,2048], index: 1, kind: input, shape index: {}]
  %s2 = inlined_call_operand.hbm [shape: s8[2,4,2048], index: 2, kind: output, shape index: {}]
  %s3 = sld [smem:[#allocation0]]
  $region45: #{tpu_custom_call.1} parent=0
    _
  %s5 = ssub.s32 1, %s3
  %s6 = scalar_select 0, %s5, %s3
  %7 = sst [smem:[#allocation2]] %s0
  $region1: #{tpu_custom_call.1} parent=0
    #allocation3 [shape = 'u8[65536]{0}', space=vmem, size = 0x10000, scoped, tag = 'input window, operand 1']
    #allocation4 [shape = 's32[2]{0}', space=sflag, size = 0x8, scoped, tag = 'scoped memory for tpu_custom_call.1']
    #allocation5 [shape = 's32[2]{0}', space=sflag, size = 0x8, scoped, tag = 'scoped memory for tpu_custom_call.1']
    #allocation6 [shape = 'u8[16384]{0}', space=vmem, size = 0x4000, scoped, tag = 'output window, operand 0']
    %8 = vsyncpa [#allocation4], 0
    %s9 = scalar_lea.sflag [#allocation4], 1
    %10 = vsyncpa %s9, 0
    %11 = vsyncpa [#allocation5], 0
    %s12 = scalar_lea.sflag [#allocation5], 1
    %13 = vsyncpa %s12, 0
    loop: start=0, step=1, limit=4
    $region2: #{tpu_custom_call.1} parent=1 // loop_pre_header
      _
    $region3: #{tpu_custom_call.1} parent=1 // loop_header
      %s15 = sphi 0, %s19
      %p16 = scmp.ge.s32.totalorder %s15, 4
      %s22 = sphi 0, %s34
      %s23 = sphi 0, %s30
      %s24 = sphi 0, %s22
      %s25 = sphi 0, %s23
      %s26 = sphi 0, %s24
      %s27 = sphi 0, %s25
      %s35 = sphi 0, %s35
      %s37 = sphi 0, %s35
      %s38 = sphi 0, %s37
      %s52 = sphi 0, %s38
      %s60 = sphi 0, %s62
      %s63 = sphi 0, %s60
      %s64 = sphi 0, %s63
      %s80 = sphi 0, %s64
      %s88 = sphi 0, %s90
      %s91 = sphi 0, %s88
      %s92 = sphi 0, %s91
      %s108 = sphi 0, %s92
    $region4: #{tpu_custom_call.1} parent=1 // loop_header_branch
      %18 = sbr.rel (%p16) target = $region8
    $region5: #{tpu_custom_call.1} parent=1 // loop_body
      %s20 = ssub.s32 %s15, 1
      %s21 = ssub.s32 %s15, 2
      %s28 = sadd.s32 1, %s23
      %p29 = scmp.ge.s32.totalorder %s28, 1
      %s30 = scalar_select %p29, 0, %s28
      %s31 = sadd.s32 1, %s22
      %s32 = scalar_select %p29, %s31, %s22
      %p33 = scmp.ge.s32.totalorder %s32, 2
      %s34 = scalar_select %p33, 0, %s32
      %s36 = sadd.s32 %s35, 1
      %p39 = scmp.eq.s32.totalorder %s15, 1
      %p40 = scmp.ne.s32.totalorder %s35, %s37
      %p41 = scmp.eq.s32.totalorder %s15, 0
      %p42 = por %p40, %p41
      %p43 = scmp.ne.s32.totalorder %s35, %s37
      %p44 = scmp.eq.s32.totalorder %s20, 1
      %p45 = por %p43, %p44
      %p46 = scmp.ne.s32.totalorder %s37, %s38
      %p47 = scmp.eq.s32.totalorder %s20, 0
      %p48 = por %p46, %p47
      %p49 = scmp.ne.s32.totalorder %s37, %s38
      %p50 = scmp.eq.s32.totalorder %s21, 1
      %p51 = por %p49, %p50
      %p53 = scmp.ne.s32.totalorder %s38, %s52
      %p54 = scmp.eq.s32.totalorder %s21, 0
      %p55 = por %p53, %p54
      %s56 = ssub.s32 %s22, %s34
      %s57 = ssub.s32 %s23, %s30
      %s58 = sor.u32 %s56, %s57
      %p59 = scmp.eq.s32.totalorder %s58, 0
      %s61 = sadd.s32 %s60, 1
      %s62 = scalar_select %p59, %s60, %s61
      %p65 = pneg %p59
      %p66 = scmp.eq.s32.totalorder %s15, 1
      %p67 = por %p65, %p66
      %p68 = scmp.ne.s32.totalorder %s60, %s63
      %p69 = scmp.eq.s32.totalorder %s15, 0
      %p70 = por %p68, %p69
      %p71 = scmp.ne.s32.totalorder %s60, %s63
      %p72 = scmp.eq.s32.totalorder %s20, 1
      %p73 = por %p71, %p72
      %p74 = scmp.ne.s32.totalorder %s63, %s64
      %p75 = scmp.eq.s32.totalorder %s20, 0
      %p76 = por %p74, %p75
      %p77 = scmp.ne.s32.totalorder %s63, %s64
      %p78 = scmp.eq.s32.totalorder %s21, 1
      %p79 = por %p77, %p78
      %p81 = scmp.ne.s32.totalorder %s64, %s80
      %p82 = scmp.eq.s32.totalorder %s21, 0
      %p83 = por %p81, %p82
      %s84 = ssub.s32 %s22, %s34
      %s85 = ssub.s32 %s23, %s30
      %s86 = sor.u32 %s84, %s85
      %p87 = scmp.eq.s32.totalorder %s86, 0
      %s89 = sadd.s32 %s88, 1
      %s90 = scalar_select %p87, %s88, %s89
      %p93 = pneg %p87
      %p94 = scmp.eq.s32.totalorder %s15, 1
      %p95 = por %p93, %p94
      %p96 = scmp.ne.s32.totalorder %s88, %s91
      %p97 = scmp.eq.s32.totalorder %s15, 0
      %p98 = por %p96, %p97
      %p99 = scmp.ne.s32.totalorder %s88, %s91
      %p100 = scmp.eq.s32.totalorder %s20, 1
      %p101 = por %p99, %p100
      %p102 = scmp.ne.s32.totalorder %s91, %s92
      %p103 = scmp.eq.s32.totalorder %s20, 0
      %p104 = por %p102, %p103
      %p105 = scmp.ne.s32.totalorder %s91, %s92
      %p106 = scmp.eq.s32.totalorder %s21, 1
      %p107 = por %p105, %p106
      %p109 = scmp.ne.s32.totalorder %s92, %s108
      %p110 = scmp.eq.s32.totalorder %s21, 0
      %p111 = por %p109, %p110
      %p112 = scmp.le.s32.totalorder 1, %s15
      %p113 = scmp.lt.s32.totalorder %s15, 3
      %p114 = pnand %p112, %p113
      %p115 = pneg %p114
      // Predicated region
      $region9: #{tpu_custom_call.1} parent=5 // pred_check
        _
      $region10: #{tpu_custom_call.1} parent=5 // pred_check_branch
        %117 = sbr.rel (%p114) target = $region12
      $region11: #{tpu_custom_call.1} parent=5 // pred_region
        %s118 = ssub.s32 %s15, 1
        // Predicated region
        $region13: #{tpu_custom_call.1} parent=11 // pred_check
          %p119 = pneg %p48
        $region14: #{tpu_custom_call.1} parent=11 // pred_check_branch
          %121 = sbr.rel (%p119) target = $region16
        $region15: #{tpu_custom_call.1} parent=11 // pred_region
          _
        $region16: #{tpu_custom_call.1} parent=11 // pred_fallthru
          _
      $region12: #{tpu_custom_call.1} parent=5 // pred_fallthru
        _
      %p122 = scmp.lt.s32.totalorder %s15, 2
      // Predicated region
      $region17: #{tpu_custom_call.1} parent=5 // pred_check
        %p123 = pneg %p122
      $region18: #{tpu_custom_call.1} parent=5 // pred_check_branch
        %125 = sbr.rel (%p123) target = $region20
      $region19: #{tpu_custom_call.1} parent=5 // pred_region
        // Predicated region
        $region21: #{tpu_custom_call.1} parent=19 // pred_check
          %p126 = pneg %p70
        $region22: #{tpu_custom_call.1} parent=19 // pred_check_branch
          %128 = sbr.rel (%p126) target = $region24
        $region23: #{tpu_custom_call.1} parent=19 // pred_region
          %s129 = sand.u32 %s60, 1
          %s130 = scalar_lea.sflag [#allocation4], %s129
          %s131 = sand.u32 %s60, 1
          %s132 = smul.addr %s131, 64
          %s133 = scalar_lea.vmem [#allocation3], %s132
          %135 = vsyncadd %s130, 0
          %s136 = smul.addr %s23, 16
          %s137 = smul.addr %s22, 16
          %s138 = sadd.s32 %s136, %s137
          %s139 = smul.addr %s138, 4
          %s140 = scalar_lea.hbm %s1, %s139
          %s142 = sshll.u32 %s140, 4
          %s143 = int_to_ptr.hbm [resolvable:$true] %s142
          %s144 = sshll.u32 %s133, 4
          %s145 = int_to_ptr.vmem [resolvable:$true] %s144
          %147 = dma.hbm_to_vmem [thread:$0]  %s143, 1024, %s145, %s130
        $region24: #{tpu_custom_call.1} parent=19 // pred_fallthru
          _
      $region20: #{tpu_custom_call.1} parent=5 // pred_fallthru
        _
      %p148 = scmp.le.s32.totalorder 1, %s15
      %p149 = scmp.lt.s32.totalorder %s15, 3
      %p150 = pnand %p148, %p149
      %p151 = pneg %p150
      // Predicated region
      $region25: #{tpu_custom_call.1} parent=5 // pred_check
        _
      $region26: #{tpu_custom_call.1} parent=5 // pred_check_branch
        %153 = sbr.rel (%p150) target = $region28
      $region27: #{tpu_custom_call.1} parent=5 // pred_region
        %s154 = ssub.s32 %s15, 1
        %s155 = sand.u32 %s63, 1
        %s156 = scalar_lea.sflag [#allocation4], %s155
        %s157 = sand.u32 %s63, 1
        %s158 = smul.addr %s157, 64
        %s159 = scalar_lea.vmem [#allocation3], %s158
        // Predicated region
        $region29: #{tpu_custom_call.1} parent=27 // pred_check
          %p160 = pneg %p76
        $region30: #{tpu_custom_call.1} parent=27 // pred_check_branch
          %162 = sbr.rel (%p160) target = $region32
        $region31: #{tpu_custom_call.1} parent=27 // pred_region
          %164 = dma.done %s156, 1024
        $region32: #{tpu_custom_call.1} parent=27 // pred_fallthru
          _
        %p165 = pneg %p48
        %p166 = pneg %p45
        %s167 = sand.u32 %s63, 1
        %s168 = scalar_lea.sflag [#allocation4], %s167
        %s169 = sand.u32 %s63, 1
        %s170 = smul.addr %s169, 64
        %s171 = scalar_lea.vmem [#allocation3], %s170
        %p172 = pneg %p76
        %p173 = pneg %p73
        %p174 = pneg %p104
        %p175 = pneg %p101
        %s176 = sand.u32 %s91, 1
        %s177 = scalar_lea.sflag [#allocation5], %s176
        %s178 = sand.u32 %s91, 1
        %s179 = smul.addr %s178, 16
        %s180 = scalar_lea.vmem [#allocation6], %s179
        %v183 = vld [vmem:[%s159] sm:$0xff]
        %v184 = vld [vmem:[%s159 + $0x8] sm:$0xff]
        %v185 = vld [vmem:[%s159 + $0x10] sm:$0xff]
        %v186 = vld [vmem:[%s159 + $0x18] sm:$0xff]
        %v187 = vld [vmem:[%s159 + $0x20] sm:$0xff]
        %v188 = vld [vmem:[%s159 + $0x28] sm:$0xff]
        %v189 = vld [vmem:[%s159 + $0x30] sm:$0xff]
        %v190 = vld [vmem:[%s159 + $0x38] sm:$0xff]
        %s191 = sld [smem:[#allocation2]]
        %v192 = vstv %s191
        %vm193 = vcmp.gt.f32.partialorder %v183, %v192
        %vm194 = vcmp.gt.f32.partialorder %v184, %v192
        %vm195 = vcmp.gt.f32.partialorder %v185, %v192
        %vm196 = vcmp.gt.f32.partialorder %v186, %v192
        %vm197 = vcmp.gt.f32.partialorder %v187, %v192
        %vm198 = vcmp.gt.f32.partialorder %v188, %v192
        %vm199 = vcmp.gt.f32.partialorder %v189, %v192
        %vm200 = vcmp.gt.f32.partialorder %v190, %v192
        %v201 = vsel %vm193, 1, 0
        %v202 = vsel %vm194, 1, 0
        %v203 = vsel %vm195, 1, 0
        %v204 = vsel %vm196, 1, 0
        %v205 = vsel %vm197, 1, 0
        %v206 = vsel %vm198, 1, 0
        %v207 = vsel %vm199, 1, 0
        %v208 = vsel %vm200, 1, 0
        %v209 = vpack.c.b16 %v202, %v201
        %v210 = vpack.c.b16 %v204, %v203
        %v211 = vpack.c.b8 %v210, %v209
        %v212 = vpack.c.b16 %v206, %v205
        %v213 = vpack.c.b16 %v208, %v207
        %v214 = vpack.c.b8 %v213, %v212
        %vm215 = vnez %v211
        %vm216 = vnez %v214
        %v217 = vsel %vm215, 16843009, 0
        %v218 = vsel %vm216, 16843009, 0
        %220 = vst [vmem:[#allocation1] ss:$9 sm:$0xff] %v217
        %v221 = vld [vmem:[#allocation1] sm:$0xff]
        %v223 = vld [vmem:[#allocation1 + $0x9] sm:$0xff]
        %v225 = vld [vmem:[#allocation1 + $0x12] sm:$0xff]
        %v227 = vld [vmem:[#allocation1 + $0x1b] sm:$0xff]
        %v229 = vld [vmem:[#allocation1 + $0x24] sm:$0xff]
        %v231 = vld [vmem:[#allocation1 + $0x2d] sm:$0xff]
        %v233 = vld [vmem:[#allocation1 + $0x36] sm:$0xff]
        %v235 = vld [vmem:[#allocation1 + $0x3f] sm:$0xff]
        %238 = vst [vmem:[#allocation1] ss:$9 sm:$0xff] %v218
        %v239 = vld [vmem:[#allocation1] sm:$0xff]
        %v241 = vld [vmem:[#allocation1 + $0x9] sm:$0xff]
        %v243 = vld [vmem:[#allocation1 + $0x12] sm:$0xff]
        %v245 = vld [vmem:[#allocation1 + $0x1b] sm:$0xff]
        %v247 = vld [vmem:[#allocation1 + $0x24] sm:$0xff]
        %v249 = vld [vmem:[#allocation1 + $0x2d] sm:$0xff]
        %v251 = vld [vmem:[#allocation1 + $0x36] sm:$0xff]
        %v253 = vld [vmem:[#allocation1 + $0x3f] sm:$0xff]
        %vm255 = vnez %v221
        %vm256 = vnez %v223
        %vm257 = vnez %v225
        %vm258 = vnez %v227
        %vm259 = vnez %v229
        %vm260 = vnez %v231
        %vm261 = vnez %v233
        %vm262 = vnez %v235
        %vm263 = vnez %v239
        %vm264 = vnez %v241
        %vm265 = vnez %v243
        %vm266 = vnez %v245
        %vm267 = vnez %v247
        %vm268 = vnez %v249
        %vm269 = vnez %v251
        %vm270 = vnez %v253
        %v271 = vsel %vm255, 16843009, 0
        %v272 = vsel %vm256, 16843009, 0
        %v273 = vsel %vm257, 16843009, 0
        %v274 = vsel %vm258, 16843009, 0
        %v275 = vsel %vm259, 16843009, 0
        %v276 = vsel %vm260, 16843009, 0
        %v277 = vsel %vm261, 16843009, 0
        %v278 = vsel %vm262, 16843009, 0
        %v279 = vsel %vm263, 16843009, 0
        %v280 = vsel %vm264, 16843009, 0
        %v281 = vsel %vm265, 16843009, 0
        %v282 = vsel %vm266, 16843009, 0
        %v283 = vsel %vm267, 16843009, 0
        %v284 = vsel %vm268, 16843009, 0
        %v285 = vsel %vm269, 16843009, 0
        %v286 = vsel %vm270, 16843009, 0
        %v287 = vrot.slane %v272, 7
        %v288 = vrot.slane %v273, 6
        %v289 = vrot.slane %v274, 5
        %v290 = vrot.slane %v275, 4
        %v291 = vrot.slane %v276, 3
        %v292 = vrot.slane %v277, 2
        %v293 = vrot.slane %v278, 1
        %v294 = vrot.slane %v280, 7
        %v295 = vrot.slane %v281, 6
        %v296 = vrot.slane %v282, 5
        %v297 = vrot.slane %v283, 4
        %v298 = vrot.slane %v284, 3
        %v299 = vrot.slane %v285, 2
        %v300 = vrot.slane %v286, 1
        %vm301 = vcmask 1040384
        %v304 = vsel %vm301, %v271, %v287
        %vm305 = vcmask 1042434
        %v308 = vsel %vm305, %v288, %v289
        %vm309 = vcmask 1041408
        %v310 = vsel %vm309, %v304, %v308
        %vm311 = vcmask 1044484
        %v314 = vsel %vm311, %v290, %v291
        %vm315 = vcmask 1046534
        %v318 = vsel %vm315, %v292, %v293
        %vm319 = vcmask 1045508
        %v320 = vsel %vm319, %v314, %v318
        %vm321 = vcmask 1043456
        %v322 = vsel %vm321, %v310, %v320
        %v326 = vsel %vm301, %v279, %v294
        %v329 = vsel %vm305, %v295, %v296
        %v330 = vsel %vm309, %v326, %v329
        %v333 = vsel %vm311, %v297, %v298
        %v336 = vsel %vm315, %v299, %v300
        %v337 = vsel %vm319, %v333, %v336
        %v338 = vsel %vm321, %v330, %v337
        %340 = vst [vmem:[%s180] sm:$0xff] %v322
        %341 = vst [vmem:[%s180 + $0x8] sm:$0xff] %v338
        %s342 = sand.u32 %s91, 1
        %s343 = scalar_lea.sflag [#allocation5], %s342
        %s344 = sand.u32 %s91, 1
        %s345 = smul.addr %s344, 16
        %s346 = scalar_lea.vmem [#allocation6], %s345
        // Predicated region
        $region33: #{tpu_custom_call.1} parent=27 // pred_check
          %p347 = pneg %p101
        $region34: #{tpu_custom_call.1} parent=27 // pred_check_branch
          %349 = sbr.rel (%p347) target = $region36
        $region35: #{tpu_custom_call.1} parent=27 // pred_region
          %351 = vsyncadd %s343, 0
          %s352 = smul.addr %s25, 16
          %s353 = smul.addr %s24, 16
          %s354 = sadd.s32 %s352, %s353
          %s355 = scalar_lea.hbm %s2, %s354
          %s357 = sshll.u32 %s346, 4
          %s358 = int_to_ptr.vmem [resolvable:$true] %s357
          %s359 = sshll.u32 %s355, 4
          %s360 = int_to_ptr.hbm [resolvable:$true] %s359
          %362 = dma.vmem_to_hbm [thread:$0]  %s358, 256, %s360, %s343
        $region36: #{tpu_custom_call.1} parent=27 // pred_fallthru
          _
      $region28: #{tpu_custom_call.1} parent=5 // pred_fallthru
        _
      %p363 = scmp.le.s32.totalorder 2, %s15
      // Predicated region
      $region37: #{tpu_custom_call.1} parent=5 // pred_check
        %p364 = pneg %p363
      $region38: #{tpu_custom_call.1} parent=5 // pred_check_branch
        %366 = sbr.rel (%p364) target = $region40
      $region39: #{tpu_custom_call.1} parent=5 // pred_region
        %s367 = ssub.s32 %s15, 2
        // Predicated region
        $region41: #{tpu_custom_call.1} parent=39 // pred_check
          %p368 = pneg %p107
        $region42: #{tpu_custom_call.1} parent=39 // pred_check_branch
          %370 = sbr.rel (%p368) target = $region44
        $region43: #{tpu_custom_call.1} parent=39 // pred_region
          %s371 = sand.u32 %s92, 1
          %s372 = scalar_lea.sflag [#allocation5], %s371
          %s373 = sand.u32 %s92, 1
          %s374 = smul.addr %s373, 16
          %s375 = scalar_lea.vmem [#allocation6], %s374
          %377 = dma.done %s372, 256
        $region44: #{tpu_custom_call.1} parent=39 // pred_fallthru
          _
      $region40: #{tpu_custom_call.1} parent=5 // pred_fallthru
        _
    $region6: #{tpu_custom_call.1} parent=1 // loop_footer
      %s19 = sadd.s32 1, %s15
    $region7: #{tpu_custom_call.1} parent=1 // loop_footer_branch
      %14 = sbr.rel target = $region3
    $region8: #{tpu_custom_call.1} parent=1 // loop_exit
      _
    %378 = vsyncpa [#allocation4], 1
    %s379 = scalar_lea.sflag [#allocation4], 1
    %380 = vsyncpa %s379, 1
    %381 = vsyncpa [#allocation5], 1
    %s382 = scalar_lea.sflag [#allocation5], 1
    %383 = vsyncpa %s382, 1

</llo_original>
